<compile_context>
chip_gen: v7x
topology: tpu7x:2x2x1
jax: 0.10.0
libtpu: 0.0.40
codegen_flags: <defaults>
</compile_context>

<pallas_src>
import jax
import jax.numpy as jnp
from jax.experimental import pallas as pl
from jax.experimental.pallas import tpu as pltpu


def _round_up(x, m):
    return ((x + m - 1) // m) * m


def _mlp2_kernel(x_ref, w1_ref, b1_ref, w2_ref, b2_ref, feat_ref, out_ref):
    x = x_ref[...]
    b1 = b1_ref[...]          # (1, H) — loaded once, broadcast by the VPU add
    b2 = b2_ref[...]          # (1, O)
    # feature = x @ W1 + b1   (nn.Linear "extraction"), f32 accumulation on the MXU.
    feat = jnp.dot(x, w1_ref[...], preferred_element_type=jnp.float32) + b1
    feat_ref[...] = feat.astype(feat_ref.dtype)
    # out = feature @ W2 + b2 (nn.Linear "output"); reuse the f32 feat accumulator.
    out = jnp.dot(feat, w2_ref[...], preferred_element_type=jnp.float32) + b2
    out_ref[...] = out.astype(out_ref.dtype)


def _choose_batch_tile(B, block_batch, min_steps=2):
    """Batch tile: multiple of 8 sublanes, big enough to amortize per-step overhead,
    small enough that the grid has >= min_steps steps when B allows (v7x megacore)."""
    TB = min(block_batch, _round_up(max(B, 1), 8))
    if B > 8 * min_steps:
        TB = min(TB, _round_up(pl.cdiv(B, min_steps), 8))
    return max(8, _round_up(TB, 8))


def linear_regression_model(x, w1, b1, w2, b2, *, block_batch=2048):
    """Pallas forward of LinearRegressionModel: returns (feature, output).

    x  : (B, Fin)
    w1 : (Fin, H),  b1 : (H,)
    w2 : (H, O),    b2 : (O,)
    """
    B, Fin = x.shape
    H = w1.shape[1]
    O = w2.shape[1]
    assert w1.shape[0] == Fin and w2.shape[0] == H
    assert b1.shape == (H,) and b2.shape == (O,)

    TB = _choose_batch_tile(B, block_batch)
    grid = (pl.cdiv(B, TB),)

    b1_2d = b1.reshape(1, H)
    b2_2d = b2.reshape(1, O)

    feat, out = pl.pallas_call(
        _mlp2_kernel,
        out_shape=(
            jax.ShapeDtypeStruct((B, H), x.dtype),
            jax.ShapeDtypeStruct((B, O), x.dtype),
        ),
        grid=grid,
        in_specs=[
            pl.BlockSpec((TB, Fin), lambda i: (i, 0)),   # x: streamed per batch tile
            pl.BlockSpec((Fin, H), lambda i: (0, 0)),    # W1: VMEM-resident
            pl.BlockSpec((1, H), lambda i: (0, 0)),      # b1: VMEM-resident
            pl.BlockSpec((H, O), lambda i: (0, 0)),      # W2: VMEM-resident
            pl.BlockSpec((1, O), lambda i: (0, 0)),      # b2: VMEM-resident
        ],
        out_specs=(
            pl.BlockSpec((TB, H), lambda i: (i, 0)),     # feature (true width, no pad)
            pl.BlockSpec((TB, O), lambda i: (i, 0)),     # output  (true width, no pad)
        ),
        compiler_params=pltpu.CompilerParams(
            dimension_semantics=("parallel",),           # megacore on v7x; no-op v5e/v6e
        ),
    )(x, w1, b1_2d, w2, b2_2d)

    return feat, out


def init_params(key, input_features, output_features, hidden_units, dtype=jnp.float32):
    # Deterministic init matching nn.Linear's uniform(-1/sqrt(fan_in), 1/sqrt(fan_in)).
    k1, k2, k3, k4 = jax.random.split(key, 4)
    lim1 = 1.0 / (input_features ** 0.5)
    lim2 = 1.0 / (hidden_units ** 0.5)
    w1 = jax.random.uniform(k1, (input_features, hidden_units), dtype, -lim1, lim1)
    b1 = jax.random.uniform(k2, (hidden_units,), dtype, -lim1, lim1)
    w2 = jax.random.uniform(k3, (hidden_units, output_features), dtype, -lim2, lim2)
    b2 = jax.random.uniform(k4, (output_features,), dtype, -lim2, lim2)
    return w1, b1, w2, b2


if __name__ == "__main__":
    key = jax.random.PRNGKey(0)
    input_features = 32
    hidden_units = 64
    output_features = 16
    kx, kp, kx2 = jax.random.split(key, 3)
    w1, b1, w2, b2 = init_params(kp, input_features, output_features, hidden_units)

    # Small shape (single grid step, exercises narrow-lane stores).
    batch = 8
    x = jax.random.normal(kx, (batch, input_features), jnp.float32)
    feature, out = linear_regression_model(x, w1, b1, w2, b2)
    jax.block_until_ready((feature, out))
    feat_ref = x @ w1 + b1
    out_ref = feat_ref @ w2 + b2
    assert feature.shape == (batch, hidden_units) and out.shape == (batch, output_features)
    assert jnp.allclose(feature, feat_ref, atol=1e-5), "feature mismatch (small)"
    assert jnp.allclose(out, out_ref, atol=1e-5), "output mismatch (small)"

    # Larger, non-multiple batch (exercises multi-step grid + masked edge block,
    # with a small block_batch override to force several steps at this size).
    batch2 = 600
    x2 = jax.random.normal(kx2, (batch2, input_features), jnp.float32)
    feature2, out2 = linear_regression_model(x2, w1, b1, w2, b2, block_batch=256)
    jax.block_until_ready((feature2, out2))
    feat_ref2 = x2 @ w1 + b1
    out_ref2 = feat_ref2 @ w2 + b2
    assert jnp.allclose(feature2, feat_ref2, atol=1e-5), "feature mismatch (tiled)"
    assert jnp.allclose(out2, out_ref2, atol=1e-5), "output mismatch (tiled)"

    print("KERNEL_OK")
</pallas_src>

<mosaic_0001>
module attributes {stable_mosaic.version = 11 : i64} {
  func.func @_mlp2_kernel(%arg0: i32, %arg1: memref<8x32xf32, #tpu.memory_space<vmem>>, %arg2: memref<32x64xf32, #tpu.memory_space<vmem>>, %arg3: memref<1x64xf32, #tpu.memory_space<vmem>>, %arg4: memref<64x16xf32, #tpu.memory_space<vmem>>, %arg5: memref<1x16xf32, #tpu.memory_space<vmem>>, %arg6: memref<8x64xf32, #tpu.memory_space<vmem>>, %arg7: memref<8x16xf32, #tpu.memory_space<vmem>>) attributes {dimension_semantics = [#tpu.dimension_semantics<parallel>], iteration_bounds = array<i64: 1>, scalar_prefetch = 0 : i64, scratch_operands = 0 : i64, tpu.core_type = #tpu.core_type<tc>, window_params = [{transform_indices = @transform_0, window_bounds = array<i64: 8, 32>}, {pipeline_mode = #tpu.pipeline_mode<synchronous>, transform_indices = @transform_1, window_bounds = array<i64: 32, 64>}, {pipeline_mode = #tpu.pipeline_mode<synchronous>, transform_indices = @transform_2, window_bounds = array<i64: 1, 64>}, {pipeline_mode = #tpu.pipeline_mode<synchronous>, transform_indices = @transform_3, window_bounds = array<i64: 64, 16>}, {pipeline_mode = #tpu.pipeline_mode<synchronous>, transform_indices = @transform_4, window_bounds = array<i64: 1, 16>}, {transform_indices = @transform_5, window_bounds = array<i64: 8, 64>}, {transform_indices = @transform_6, window_bounds = array<i64: 8, 16>}]} {
    %c0 = arith.constant 0 : index
    %c0_0 = arith.constant 0 : index
    %0 = vector.load %arg1[%c0, %c0_0] : memref<8x32xf32, #tpu.memory_space<vmem>>, vector<8x32xf32>
    %c0_1 = arith.constant 0 : index
    %c0_2 = arith.constant 0 : index
    %1 = vector.load %arg3[%c0_1, %c0_2] : memref<1x64xf32, #tpu.memory_space<vmem>>, vector<1x64xf32>
    %c0_3 = arith.constant 0 : index
    %c0_4 = arith.constant 0 : index
    %2 = vector.load %arg5[%c0_3, %c0_4] : memref<1x16xf32, #tpu.memory_space<vmem>>, vector<1x16xf32>
    %c0_5 = arith.constant 0 : index
    %c0_6 = arith.constant 0 : index
    %3 = vector.load %arg2[%c0_5, %c0_6] : memref<32x64xf32, #tpu.memory_space<vmem>>, vector<32x64xf32>
    %cst = arith.constant dense<0.000000e+00> : vector<8x64xf32>
    %4 = tpu.matmul %0, %3, %cst {dimension_numbers = #tpu.dot_dimension_numbers<[1], [0], [0], [1], [0, 0, 1, 1], [], []>} : vector<8x32xf32>, vector<32x64xf32>, vector<8x64xf32> -> vector<8x64xf32>
    %5 = vector.broadcast %1 : vector<1x64xf32> to vector<8x64xf32>
    %6 = arith.addf %4, %5 : vector<8x64xf32>
    %c0_7 = arith.constant 0 : index
    %c0_8 = arith.constant 0 : index
    %7 = vector.load %arg6[%c0_7, %c0_8] : memref<8x64xf32, #tpu.memory_space<vmem>>, vector<8x64xf32>
    tpu.vector_store %arg6[%c0_7, %c0_8], %6 {strides = array<i32>} : memref<8x64xf32, #tpu.memory_space<vmem>>, vector<8x64xf32>,
    %c0_9 = arith.constant 0 : index
    %c0_10 = arith.constant 0 : index
    %8 = vector.load %arg4[%c0_9, %c0_10] : memref<64x16xf32, #tpu.memory_space<vmem>>, vector<64x16xf32>
    %cst_11 = arith.constant dense<0.000000e+00> : vector<8x16xf32>
    %9 = tpu.matmul %6, %8, %cst_11 {dimension_numbers = #tpu.dot_dimension_numbers<[1], [0], [0], [1], [0, 0, 1, 1], [], []>} : vector<8x64xf32>, vector<64x16xf32>, vector<8x16xf32> -> vector<8x16xf32>
    %10 = vector.broadcast %2 : vector<1x16xf32> to vector<8x16xf32>
    %11 = arith.addf %9, %10 : vector<8x16xf32>
    %c0_12 = arith.constant 0 : index
    %c0_13 = arith.constant 0 : index
    %12 = vector.load %arg7[%c0_12, %c0_13] : memref<8x16xf32, #tpu.memory_space<vmem>>, vector<8x16xf32>
    tpu.vector_store %arg7[%c0_12, %c0_13], %11 {strides = array<i32>} : memref<8x16xf32, #tpu.memory_space<vmem>>, vector<8x16xf32>,
    return
  }
  func.func @transform_0(%arg0: i32) -> (i32, i32) {
    %c0_i32 = arith.constant 0 : i32
    %c0_i32_0 = arith.constant 0 : i32
    return %arg0, %c0_i32 : i32, i32
  }
  func.func @transform_1(%arg0: i32) -> (i32, i32) {
    %c0_i32 = arith.constant 0 : i32
    %c0_i32_0 = arith.constant 0 : i32
    %c0_i32_1 = arith.constant 0 : i32
    return %c0_i32, %c0_i32_0 : i32, i32
  }
  func.func @transform_2(%arg0: i32) -> (i32, i32) {
    %c0_i32 = arith.constant 0 : i32
    %c0_i32_0 = arith.constant 0 : i32
    %c0_i32_1 = arith.constant 0 : i32
    return %c0_i32, %c0_i32_0 : i32, i32
  }
  func.func @transform_3(%arg0: i32) -> (i32, i32) {
    %c0_i32 = arith.constant 0 : i32
    %c0_i32_0 = arith.constant 0 : i32
    %c0_i32_1 = arith.constant 0 : i32
    return %c0_i32, %c0_i32_0 : i32, i32
  }
  func.func @transform_4(%arg0: i32) -> (i32, i32) {
    %c0_i32 = arith.constant 0 : i32
    %c0_i32_0 = arith.constant 0 : i32
    %c0_i32_1 = arith.constant 0 : i32
    return %c0_i32, %c0_i32_0 : i32, i32
  }
  func.func @transform_5(%arg0: i32) -> (i32, i32) {
    %c0_i32 = arith.constant 0 : i32
    %c0_i32_0 = arith.constant 0 : i32
    return %arg0, %c0_i32 : i32, i32
  }
  func.func @transform_6(%arg0: i32) -> (i32, i32) {
    %c0_i32 = arith.constant 0 : i32
    %c0_i32_0 = arith.constant 0 : i32
    return %arg0, %c0_i32 : i32, i32
  }
}

</mosaic_0001>

<llo_original>
// kernel: tpu_custom_call.1
$region0: #{tpu_custom_call.1}
  #allocation0 [shape = 'u32[]', space=smem, size = 0x4, offset = 0x4, fixed_abs, tag = 'smem constant byte address 0x4 - core index']
  #allocation1 [shape = 'u32[144,128]{1,0:T(1,128)}', space=vmem, size = 0x12000, scoped, tag = 'internal scratch']
  %s0 = inlined_call_operand.vmem [shape: f32[8,32], index: 0, kind: input, shape index: {}]
  %s1 = inlined_call_operand.vmem [shape: f32[32,64], index: 1, kind: input, shape index: {}]
  %s2 = inlined_call_operand.vmem [shape: f32[1,64], index: 2, kind: input, shape index: {}]
  %s3 = inlined_call_operand.vmem [shape: f32[64,16], index: 3, kind: input, shape index: {}]
  %s4 = inlined_call_operand.vmem [shape: f32[1,16], index: 4, kind: input, shape index: {}]
  %s5 = inlined_call_operand.hbm [shape: f32[8,64], index: 5, kind: output, shape index: {0}]
  %s6 = inlined_call_operand.hbm [shape: f32[8,16], index: 6, kind: output, shape index: {1}]
  %7 = xla_tuple %s5, %s6
  %s8 = sld [smem:[#allocation0]]
  $region38: #{tpu_custom_call.1} parent=0
    _
  %s10 = ssub.s32 1, %s8
  %s11 = scalar_select 0, %s10, %s8
  $region1: #{tpu_custom_call.1} parent=0
    #allocation2 [shape = 'u8[4096]{0}', space=vmem, size = 0x1000, scoped, tag = 'output window, operand 0, single buffered']
    #allocation3 [shape = 's32[1]{0}', space=sflag, size = 0x4, scoped, tag = 'scoped memory for tpu_custom_call.1']
    #allocation4 [shape = 'u8[4096]{0}', space=vmem, size = 0x1000, scoped, tag = 'output window, operand 1, single buffered']
    #allocation5 [shape = 's32[1]{0}', space=sflag, size = 0x4, scoped, tag = 'scoped memory for tpu_custom_call.1']
    %12 = vsyncpa [#allocation3], 0
    %13 = vsyncpa [#allocation5], 0
    // Predicated region
    $region2: #{tpu_custom_call.1} parent=1 // pred_check
      _
    $region3: #{tpu_custom_call.1} parent=1 // pred_check_branch
      %15 = sbr.rel (0) target = $region5
    $region4: #{tpu_custom_call.1} parent=1 // pred_region
      _
    $region5: #{tpu_custom_call.1} parent=1 // pred_fallthru
      _
    // Predicated region
    $region6: #{tpu_custom_call.1} parent=1 // pred_check
      _
    $region7: #{tpu_custom_call.1} parent=1 // pred_check_branch
      %17 = sbr.rel (0) target = $region9
    $region8: #{tpu_custom_call.1} parent=1 // pred_region
      _
    $region9: #{tpu_custom_call.1} parent=1 // pred_fallthru
      _
    // Predicated region
    $region10: #{tpu_custom_call.1} parent=1 // pred_check
      _
    $region11: #{tpu_custom_call.1} parent=1 // pred_check_branch
      %19 = sbr.rel (0) target = $region13
    $region12: #{tpu_custom_call.1} parent=1 // pred_region
      _
    $region13: #{tpu_custom_call.1} parent=1 // pred_fallthru
      _
    // Predicated region
    $region14: #{tpu_custom_call.1} parent=1 // pred_check
      _
    $region15: #{tpu_custom_call.1} parent=1 // pred_check_branch
      %21 = sbr.rel (0) target = $region17
    $region16: #{tpu_custom_call.1} parent=1 // pred_region
      _
    $region17: #{tpu_custom_call.1} parent=1 // pred_fallthru
      _
    // Predicated region
    $region18: #{tpu_custom_call.1} parent=1 // pred_check
      _
    $region19: #{tpu_custom_call.1} parent=1 // pred_check_branch
      %23 = sbr.rel (0) target = $region21
    $region20: #{tpu_custom_call.1} parent=1 // pred_region
      _
    $region21: #{tpu_custom_call.1} parent=1 // pred_fallthru
      _
    %v24 = vld [vmem:[%s0] sm:$0xff]
    %v25 = vld [vmem:[%s2] sm:$0x1]
    %v26 = vld [vmem:[%s4] sm:$0x1]
    %v27 = vld [vmem:[%s1] sm:$0xff]
    %v28 = vld [vmem:[%s1 + $0x8] sm:$0xff]
    %v29 = vld [vmem:[%s1 + $0x10] sm:$0xff]
    %v30 = vld [vmem:[%s1 + $0x18] sm:$0xff]
    %v32 = vlaneseq
    %v33 = vshrl.u32 %v32, 7
    %v34 = vsub.s32 0, %v33
    %v35 = vrot.slane %v25, %v34
    %vm37 = vcmask 261120
    %v39 = vsel %vm37, %v24, 0
    %41 = vmatprep.subr.mxu0 0.0
    %42 = vmatpush1.msra.mxu0 %v27
    %43 = vmatprep.subr.mxu0 0.0
    %44 = vmatpush1.msra.mxu0 %v28
    %45 = vmatprep.subr.mxu0 0.0
    %46 = vmatpush1.msra.mxu0 %v29
    %47 = vmatprep.subr.mxu0 0.0
    %48 = vmatpush1.msra.mxu0 %v30
    %49 = vmatprep.subr.mxu0 0.0
    %50 = vmatpush1.msra.mxu0 0.0
    %51 = vmatprep.subr.mxu0 0.0
    %52 = vmatpush1.msra.mxu0 0.0
    %53 = vmatprep.subr.mxu0 0.0
    %54 = vmatpush1.msra.mxu0 0.0
    %55 = vmatprep.subr.mxu0 0.0
    %56 = vmatpush1.msra.mxu0 0.0
    %57 = vmatprep.subr.mxu0 0.0
    %58 = vmatpush1.msra.mxu0 0.0
    %59 = vmatprep.subr.mxu0 0.0
    %60 = vmatpush1.msra.mxu0 0.0
    %61 = vmatprep.subr.mxu0 0.0
    %62 = vmatpush1.msra.mxu0 0.0
    %63 = vmatprep.subr.mxu0 0.0
    %64 = vmatpush1.msra.mxu0 0.0
    %65 = vmatprep.subr.mxu0 0.0
    %66 = vmatpush1.msra.mxu0 0.0
    %67 = vmatprep.subr.mxu0 0.0
    %68 = vmatpush1.msra.mxu0 0.0
    %69 = vmatprep.subr.mxu0 0.0
    %70 = vmatpush1.msra.mxu0 0.0
    %71 = vmatprep.subr.mxu0 0.0
    %72 = vmatpush1.msra.mxu0 0.0
    %73 = vmatprep.subr.mxu0 0.0
    %74 = vmatpush1.msra.mxu0 0.0
    %75 = vmatprep.subr.mxu0 0.0
    %76 = vmatpush1.msra.mxu0 0.0
    %77 = vmatprep.subr.mxu0 0.0
    %78 = vmatpush1.msra.mxu0 0.0
    %79 = vmatprep.subr.mxu0 0.0
    %80 = vmatpush1.msra.mxu0 0.0
    %81 = vmatprep.subr.mxu0 0.0
    %82 = vmatpush1.msra.mxu0 0.0
    %83 = vmatprep.subr.mxu0 0.0
    %84 = vmatpush1.msra.mxu0 0.0
    %85 = vmatprep.subr.mxu0 0.0
    %86 = vmatpush1.msra.mxu0 0.0
    %87 = vmatprep.subr.mxu0 0.0
    %88 = vmatpush1.msra.mxu0 0.0
    %89 = vmatprep.subr.mxu0 0.0
    %90 = vmatpush1.msra.mxu0 0.0
    %91 = vmatprep.subr.mxu0 0.0
    %92 = vmatpush1.msra.mxu0 0.0
    %93 = vmatprep.subr.mxu0 0.0
    %94 = vmatpush1.msra.mxu0 0.0
    %95 = vmatprep.subr.mxu0 0.0
    %96 = vmatpush1.msra.mxu0 0.0
    %97 = vmatprep.subr.mxu0 0.0
    %98 = vmatpush1.msra.mxu0 0.0
    %99 = vmatprep.subr.mxu0 0.0
    %100 = vmatpush1.msra.mxu0 0.0
    %101 = vmatprep.subr.mxu0 0.0
    %102 = vmatpush1.msra.mxu0 0.0
    %103 = vmatprep.subr.mxu0 0.0
    %104 = vmatpush1.msra.mxu0 0.0
    %105 = vmatprep.mubr.f32.mxu0 0.0
    %106 = vmatmul.mubr.f32.gmra.mrb[0].mxu0 %v39
    %v107 = vpop.f32.mrb[0].mxu0
    %v108 = vadd.f32 %v35, %v107
    %v109 = vpop.f32.mrb[0].mxu0
    %110 = vdwg.mxu0
    %vm111 = vcmask 523264
    %112 = vst.msk [vmem:[#allocation2] sm:$0xff] %vm111, %v108
    %v113 = vld [vmem:[%s3] sm:$0xff]
    %v114 = vld [vmem:[%s3 + $0x8] sm:$0xff]
    %v115 = vld [vmem:[%s3 + $0x10] sm:$0xff]
    %v116 = vld [vmem:[%s3 + $0x18] sm:$0xff]
    %v117 = vld [vmem:[%s3 + $0x20] sm:$0xff]
    %v118 = vld [vmem:[%s3 + $0x28] sm:$0xff]
    %v119 = vld [vmem:[%s3 + $0x30] sm:$0xff]
    %v120 = vld [vmem:[%s3 + $0x38] sm:$0xff]
    %v122 = vlaneseq
    %v123 = vshrl.u32 %v122, 7
    %v124 = vsub.s32 0, %v123
    %v125 = vrot.slane %v26, %v124
    %v128 = vsel %vm111, %v108, 0
    %130 = vmatprep.subr.mxu0 0.0
    %131 = vmatpush1.msra.mxu0 %v113
    %132 = vmatprep.subr.mxu0 0.0
    %133 = vmatpush1.msra.mxu0 %v114
    %134 = vmatprep.subr.mxu0 0.0
    %135 = vmatpush1.msra.mxu0 %v115
    %136 = vmatprep.subr.mxu0 0.0
    %137 = vmatpush1.msra.mxu0 %v116
    %138 = vmatprep.subr.mxu0 0.0
    %139 = vmatpush1.msra.mxu0 %v117
    %140 = vmatprep.subr.mxu0 0.0
    %141 = vmatpush1.msra.mxu0 %v118
    %142 = vmatprep.subr.mxu0 0.0
    %143 = vmatpush1.msra.mxu0 %v119
    %144 = vmatprep.subr.mxu0 0.0
    %145 = vmatpush1.msra.mxu0 %v120
    %146 = vmatprep.subr.mxu0 0.0
    %147 = vmatpush1.msra.mxu0 0.0
    %148 = vmatprep.subr.mxu0 0.0
    %149 = vmatpush1.msra.mxu0 0.0
    %150 = vmatprep.subr.mxu0 0.0
    %151 = vmatpush1.msra.mxu0 0.0
    %152 = vmatprep.subr.mxu0 0.0
    %153 = vmatpush1.msra.mxu0 0.0
    %154 = vmatprep.subr.mxu0 0.0
    %155 = vmatpush1.msra.mxu0 0.0
    %156 = vmatprep.subr.mxu0 0.0
    %157 = vmatpush1.msra.mxu0 0.0
    %158 = vmatprep.subr.mxu0 0.0
    %159 = vmatpush1.msra.mxu0 0.0
    %160 = vmatprep.subr.mxu0 0.0
    %161 = vmatpush1.msra.mxu0 0.0
    %162 = vmatprep.subr.mxu0 0.0
    %163 = vmatpush1.msra.mxu0 0.0
    %164 = vmatprep.subr.mxu0 0.0
    %165 = vmatpush1.msra.mxu0 0.0
    %166 = vmatprep.subr.mxu0 0.0
    %167 = vmatpush1.msra.mxu0 0.0
    %168 = vmatprep.subr.mxu0 0.0
    %169 = vmatpush1.msra.mxu0 0.0
    %170 = vmatprep.subr.mxu0 0.0
    %171 = vmatpush1.msra.mxu0 0.0
    %172 = vmatprep.subr.mxu0 0.0
    %173 = vmatpush1.msra.mxu0 0.0
    %174 = vmatprep.subr.mxu0 0.0
    %175 = vmatpush1.msra.mxu0 0.0
    %176 = vmatprep.subr.mxu0 0.0
    %177 = vmatpush1.msra.mxu0 0.0
    %178 = vmatprep.subr.mxu0 0.0
    %179 = vmatpush1.msra.mxu0 0.0
    %180 = vmatprep.subr.mxu0 0.0
    %181 = vmatpush1.msra.mxu0 0.0
    %182 = vmatprep.subr.mxu0 0.0
    %183 = vmatpush1.msra.mxu0 0.0
    %184 = vmatprep.subr.mxu0 0.0
    %185 = vmatpush1.msra.mxu0 0.0
    %186 = vmatprep.subr.mxu0 0.0
    %187 = vmatpush1.msra.mxu0 0.0
    %188 = vmatprep.subr.mxu0 0.0
    %189 = vmatpush1.msra.mxu0 0.0
    %190 = vmatprep.subr.mxu0 0.0
    %191 = vmatpush1.msra.mxu0 0.0
    %192 = vmatprep.subr.mxu0 0.0
    %193 = vmatpush1.msra.mxu0 0.0
    %194 = vmatprep.mubr.f32.mxu0 0.0
    %195 = vmatmul.mubr.f32.gmra.mrb[0].mxu0 %v128
    %v196 = vpop.f32.mrb[0].mxu0
    %v197 = vadd.f32 %v125, %v196
    %v198 = vpop.f32.mrb[0].mxu0
    %199 = vdwg.mxu0
    %vm200 = vcmask 130048
    %201 = vst.msk [vmem:[#allocation4] sm:$0xff] %vm200, %v197
    // Predicated region
    $region22: #{tpu_custom_call.1} parent=1 // pred_check
      _
    $region23: #{tpu_custom_call.1} parent=1 // pred_check_branch
      %203 = sbr.rel (0) target = $region25
    $region24: #{tpu_custom_call.1} parent=1 // pred_region
      %s205 = ssub.s32 128, 128
      %206 = vsyncadd [#allocation3], %s205
      %s208 = sshll.u32 [#allocation2], 4
      %s209 = int_to_ptr.vmem [resolvable:$true] %s208
      %211 = dma.vmem_to_hbm [thread:$0]  %s209, 128, %s5, [#allocation3]
    $region25: #{tpu_custom_call.1} parent=1 // pred_fallthru
      _
    // Predicated region
    $region26: #{tpu_custom_call.1} parent=1 // pred_check
      _
    $region27: #{tpu_custom_call.1} parent=1 // pred_check_branch
      %213 = sbr.rel (0) target = $region29
    $region28: #{tpu_custom_call.1} parent=1 // pred_region
      %s215 = ssub.s32 128, 128
      %216 = vsyncadd [#allocation5], %s215
      %s218 = sshll.u32 [#allocation4], 4
      %s219 = int_to_ptr.vmem [resolvable:$true] %s218
      %221 = dma.vmem_to_hbm [thread:$0]  %s219, 128, %s6, [#allocation5]
    $region29: #{tpu_custom_call.1} parent=1 // pred_fallthru
      _
    // Predicated region
    $region30: #{tpu_custom_call.1} parent=1 // pred_check
      _
    $region31: #{tpu_custom_call.1} parent=1 // pred_check_branch
      %223 = sbr.rel (0) target = $region33
    $region32: #{tpu_custom_call.1} parent=1 // pred_region
      %224 = dma.done [#allocation3], 128
    $region33: #{tpu_custom_call.1} parent=1 // pred_fallthru
      _
    // Predicated region
    $region34: #{tpu_custom_call.1} parent=1 // pred_check
      _
    $region35: #{tpu_custom_call.1} parent=1 // pred_check_branch
      %226 = sbr.rel (0) target = $region37
    $region36: #{tpu_custom_call.1} parent=1 // pred_region
      %227 = dma.done [#allocation5], 128
    $region37: #{tpu_custom_call.1} parent=1 // pred_fallthru
      _
    %228 = vsyncpa [#allocation3], 1
    %229 = vsyncpa [#allocation5], 1

</llo_original>
